<compile_context>
chip_gen: v7x
topology: tpu7x:2x2x1
jax: 0.10.0
libtpu: 0.0.40
codegen_flags: <defaults>
</compile_context>

<pallas_src>
import functools
import math

import jax
import jax.numpy as jnp
from jax.experimental import pallas as pl
from jax.experimental.pallas import tpu as pltpu


# ---------------------------------------------------------------------------
# helpers
# ---------------------------------------------------------------------------

def _round_up(x, m):
    return ((x + m - 1) // m) * m


def _cdiv(a, b):
    return (a + b - 1) // b


def _vmem_capacity_bytes():
    """Physical VMEM of the current chip generation (conservative fallback)."""
    try:
        return int(pltpu.get_tpu_info().vmem_capacity_bytes)
    except Exception:
        return 64 * 1024 * 1024  # v7x-sized fallback: safe on every generation


def _largest_aligned_divisor(n, target, align=128):
    """Largest multiple of `align` that divides n and is <= target (None if none)."""
    best = None
    t = align
    while t <= min(n, target):
        if n % t == 0:
            best = t
        t += align
    return best


# ---------------------------------------------------------------------------
# kernel
# ---------------------------------------------------------------------------

def ffn_kernel(x_ref, w1_ref, b1_ref, w2_ref, b2_ref, o_ref, acc_ref, *,
               approximate_gelu):
    # Grid step (i, k): token tile i, hidden tile k.
    #   acc[i] += gelu(x[i] @ W1[:, k] + b1[k]) @ W2[k, :]
    #   finalize at k == last:  out[i] = acc[i] + b2
    k = pl.program_id(1)

    @pl.when(k == 0)
    def _init():
        acc_ref[...] = jnp.zeros_like(acc_ref)

    # linear1 on this hidden tile: (tm, E) @ (E, th) -> (tm, th), f32 accumulate.
    # x/W1 stay in their (bf16) compute dtype going into the MXU.
    h = jnp.dot(x_ref[...], w1_ref[...], preferred_element_type=jnp.float32)
    h = h + b1_ref[...].astype(jnp.float32)

    # GELU in f32. approximate=True (tanh) rides the EUP; approximate=False matches
    # torch.nn.functional.gelu's erf default exactly.
    h = jax.nn.gelu(h, approximate=approximate_gelu)

    # TODO(synk): dropout (p=0.1) omitted — identity at inference.

    # linear2 partial contraction over this hidden tile; accumulate into (tm, E) f32.
    acc_ref[...] += jnp.dot(h.astype(w2_ref.dtype), w2_ref[...],
                            preferred_element_type=jnp.float32)

    @pl.when(k == pl.num_programs(1) - 1)
    def _finalize():
        o_ref[...] = (acc_ref[...] + b2_ref[...].astype(jnp.float32)).astype(o_ref.dtype)


# ---------------------------------------------------------------------------
# wrapper
# ---------------------------------------------------------------------------

def feed_forward(x, w1, b1, w2, b2, *, compute_dtype=jnp.bfloat16,
                 tm=None, th=None, approximate_gelu=True):
    """x: [B, S, E] -> [B, S, E].  w1: [E, H], b1: [H], w2: [H, E], b2: [E].

    compute_dtype: matmul datapath dtype (bf16 default; f32 accumulation always).
    tm / th: optional token / hidden tile overrides (otherwise budget-derived).
    """
    B, S, E = x.shape
    E_in, H = w1.shape
    assert E_in == E and w2.shape == (H, E) and b1.shape == (H,) and b2.shape == (E,)
    M = B * S
    out_dtype = x.dtype

    # Datapath casts. Store weights in compute_dtype (see init_ffn_params) so these
    # are no-ops for the weights; only the activation cast happens per call.
    x2 = x.reshape(M, E).astype(compute_dtype)
    w1c = w1.astype(compute_dtype)
    w2c = w2.astype(compute_dtype)
    b1f = b1.astype(jnp.float32)
    b2f = b2.astype(jnp.float32)

    cb = jnp.dtype(compute_dtype).itemsize
    ob = jnp.dtype(out_dtype).itemsize

    vmem_cap = _vmem_capacity_bytes()
    budget = int(vmem_cap * 0.85)  # leave headroom for compiler internal scratch

    def plan_bytes(tm_e, th_e):
        # Double-buffered inputs/outputs + f32 accumulator scratch.
        return (2 * tm_e * E * cb            # x tile
                + 2 * tm_e * E * ob          # out tile
                + tm_e * E * 4               # f32 accumulator
                + 2 * E * th_e * cb          # W1 tile
                + 2 * th_e * E * cb          # W2 tile
                + 2 * th_e * 4 + 2 * E * 4)  # b1 tile + b2 (f32)

    # ---- token tile -------------------------------------------------------
    tm_target = tm if tm is not None else 512
    tm_eff = _round_up(min(tm_target, _round_up(M, 8)), 8)
    # >= 2 token tiles whenever possible so the "parallel" axis feeds both v7x TCs.
    if M > 8 and _cdiv(M, tm_eff) < 2:
        tm_eff = _round_up(_cdiv(M, 2), 8)

    # ---- hidden tile: resident weights if the whole plan fits VMEM --------
    if th is None:
        if plan_bytes(tm_eff, H) <= budget:
            th_eff = H                       # W1/W2 DMA'd exactly once
        else:
            th_eff = _largest_aligned_divisor(H, target=512) or min(512, _round_up(H, 128))
    else:
        th_eff = H if th >= H else max(128, (th // 128) * 128)

    # ---- shrink until the double-buffered plan provably fits --------------
    while plan_bytes(tm_eff, th_eff) > budget:
        if tm_eff > 8:
            tm_eff = max(8, _round_up(tm_eff // 2, 8))
        elif th_eff > 128:
            th_eff = max(128, _round_up(th_eff // 2, 128))
        else:
            raise ValueError(
                f"FeedForward tile plan ({plan_bytes(tm_eff, th_eff)} B) does not fit the "
                f"VMEM budget ({budget} B); E={E} is too large for this kernel.")

    M_pad = _round_up(M, tm_eff)
    H_pad = H if th_eff >= H else _round_up(H, th_eff)
    num_i = M_pad // tm_eff
    num_k = H_pad // th_eff

    # ---- padding ----------------------------------------------------------
    if M_pad != M:
        x2 = jnp.pad(x2, ((0, M_pad - M), (0, 0)))
    if H_pad != H:
        # Fallback only (typical H is 128-divisible so th_eff divides H and this is skipped).
        # Zero-padded hidden units contribute exactly 0 (gelu(0)=0, zero W2 rows).
        w1c = jnp.pad(w1c, ((0, 0), (0, H_pad - H)))
        b1f = jnp.pad(b1f, (0, H_pad - H))
        w2c = jnp.pad(w2c, ((0, H_pad - H), (0, 0)))

    b1_2 = b1f.reshape(1, H_pad)
    b2_2 = b2f.reshape(1, E)

    # ---- cost estimate (actual traffic: weights re-read per token tile when streamed)
    weight_reads = 1 if num_k == 1 else num_i
    cost = pl.CostEstimate(
        flops=4 * M_pad * E * H_pad,         # two matmuls, 2*M*E*H flops each
        transcendentals=M_pad * H_pad,       # gelu nonlinearity
        bytes_accessed=(M_pad * E * cb                      # x read
                        + M_pad * E * ob                    # out write
                        + weight_reads * (2 * E * H_pad * cb + H_pad * 4)  # W1+W2+b1
                        + E * 4),                           # b2
    )

    kernel = functools.partial(ffn_kernel, approximate_gelu=approximate_gelu)

    out2 = pl.pallas_call(
        kernel,
        out_shape=jax.ShapeDtypeStruct((M_pad, E), out_dtype),
        grid_spec=pltpu.PrefetchScalarGridSpec(
            num_scalar_prefetch=0,
            grid=(num_i, num_k),
            in_specs=[
                pl.BlockSpec((tm_eff, E), lambda i, k: (i, 0)),      # x token tile
                pl.BlockSpec((E, th_eff), lambda i, k: (0, k)),      # W1 hidden tile
                pl.BlockSpec((1, th_eff), lambda i, k: (0, k)),      # b1 hidden tile
                pl.BlockSpec((th_eff, E), lambda i, k: (k, 0)),      # W2 hidden tile
                pl.BlockSpec((1, E), lambda i, k: (0, 0)),           # b2
            ],
            out_specs=pl.BlockSpec((tm_eff, E), lambda i, k: (i, 0)),
            scratch_shapes=[pltpu.VMEM((tm_eff, E), jnp.float32)],
        ),
        compiler_params=pltpu.CompilerParams(
            dimension_semantics=("parallel", "arbitrary"),
            vmem_limit_bytes=budget,
        ),
        cost_estimate=cost,
    )(x2, w1c, b1_2, w2c, b2_2)

    if M_pad != M:
        out2 = out2[:M]
    return out2.reshape(B, S, E)


# ---------------------------------------------------------------------------
# params / reference
# ---------------------------------------------------------------------------

def init_ffn_params(key, embed_dim, hidden_dim, dtype=jnp.bfloat16):
    """Xavier-uniform weights, zero biases (matches the module's _initialize_weights).
    Weights stored [in, out] and (by default) in bf16 so the kernel's MXU datapath
    needs no per-call cast."""
    k1, k2 = jax.random.split(key)
    lim1 = math.sqrt(6.0 / (embed_dim + hidden_dim))
    lim2 = math.sqrt(6.0 / (hidden_dim + embed_dim))
    w1 = jax.random.uniform(k1, (embed_dim, hidden_dim), jnp.float32, -lim1, lim1).astype(dtype)
    w2 = jax.random.uniform(k2, (hidden_dim, embed_dim), jnp.float32, -lim2, lim2).astype(dtype)
    b1 = jnp.zeros((hidden_dim,), jnp.float32)
    b2 = jnp.zeros((embed_dim,), jnp.float32)
    return w1, b1, w2, b2


def _reference(x, w1, b1, w2, b2, approximate):
    B, S, E = x.shape
    xf = x.reshape(-1, E).astype(jnp.float32)
    h = jax.nn.gelu(xf @ w1.astype(jnp.float32) + b1.astype(jnp.float32),
                    approximate=approximate)
    y = h @ w2.astype(jnp.float32) + b2.astype(jnp.float32)
    return y.reshape(B, S, E).astype(x.dtype)


# ---------------------------------------------------------------------------
# self-test
# ---------------------------------------------------------------------------

if __name__ == "__main__":
    key = jax.random.PRNGKey(0)
    kx, kp, kx2, kp2 = jax.random.split(key, 4)

    # --- check 1: default (bf16 datapath, tanh GELU, resident weights) -----
    batch, seq_len, embed_dim, hidden_dim = 2, 8, 32, 128
    x = jax.random.normal(kx, (batch, seq_len, embed_dim), jnp.float32)
    w1, b1, w2, b2 = init_ffn_params(kp, embed_dim, hidden_dim)          # bf16 weights

    out = feed_forward(x, w1, b1, w2, b2)                                # bf16 compute
    out = jax.block_until_ready(out)
    ref = _reference(x, w1, b1, w2, b2, approximate=True)
    assert out.shape == (batch, seq_len, embed_dim)
    assert jnp.allclose(out, ref, atol=3e-2, rtol=3e-2), "bf16 path mismatch"

    # --- check 2: f32 datapath, exact erf GELU, forced weight streaming ----
    #     (multi-tile tokens with padded tail + multi-tile hidden reduction)
    batch2, seq2, embed2, hidden2 = 2, 24, 128, 512
    x_b = jax.random.normal(kx2, (batch2, seq2, embed2), jnp.float32)
    w1_b, b1_b, w2_b, b2_b = init_ffn_params(kp2, embed2, hidden2, dtype=jnp.float32)

    out_b = feed_forward(x_b, w1_b, b1_b, w2_b, b2_b,
                         compute_dtype=jnp.float32, tm=32, th=256,
                         approximate_gelu=False)
    out_b = jax.block_until_ready(out_b)
    ref_b = _reference(x_b, w1_b, b1_b, w2_b, b2_b, approximate=False)
    assert out_b.shape == (batch2, seq2, embed2)
    assert jnp.allclose(out_b, ref_b, atol=2e-3, rtol=2e-3), "f32 streamed path mismatch"

    print("KERNEL_OK")
</pallas_src>

<mosaic_0001>
module attributes {stable_mosaic.version = 11 : i64} {
  func.func @ffn_kernel(%arg0: i32, %arg1: i32, %arg2: memref<8x32xbf16, #tpu.memory_space<vmem>>, %arg3: memref<32x128xbf16, #tpu.memory_space<vmem>>, %arg4: memref<1x128xf32, #tpu.memory_space<vmem>>, %arg5: memref<128x32xbf16, #tpu.memory_space<vmem>>, %arg6: memref<1x32xf32, #tpu.memory_space<vmem>>, %arg7: memref<8x32xf32, #tpu.memory_space<vmem>>, %arg8: memref<8x32xf32, #tpu.memory_space<vmem>>) attributes {dimension_semantics = [#tpu.dimension_semantics<parallel>, #tpu.dimension_semantics<arbitrary>], iteration_bounds = array<i64: 2, 1>, scalar_prefetch = 0 : i64, scratch_operands = 1 : i64, tpu.core_type = #tpu.core_type<tc>, window_params = [{transform_indices = @transform_0, window_bounds = array<i64: 8, 32>}, {transform_indices = @transform_1, window_bounds = array<i64: 32, 128>}, {transform_indices = @transform_2, window_bounds = array<i64: 1, 128>}, {transform_indices = @transform_3, window_bounds = array<i64: 128, 32>}, {pipeline_mode = #tpu.pipeline_mode<synchronous>, transform_indices = @transform_4, window_bounds = array<i64: 1, 32>}, {transform_indices = @transform_5, window_bounds = array<i64: 8, 32>}]} {
    %c0_i32 = arith.constant 0 : i32
    %0 = arith.cmpi eq, %arg1, %c0_i32 : i32
    %1 = arith.extui %0 : i1 to i32
    %c0_i32_0 = arith.constant 0 : i32
    %2 = arith.cmpi ne, %1, %c0_i32_0 : i32
    scf.if %2 {
      %cst_19 = arith.constant 0.000000e+00 : f32
      %31 = vector.broadcast %cst_19 : f32 to vector<8x32xf32>
      %c0_20 = arith.constant 0 : index
      %c0_21 = arith.constant 0 : index
      %32 = vector.load %arg8[%c0_20, %c0_21] : memref<8x32xf32, #tpu.memory_space<vmem>>, vector<8x32xf32>
      tpu.vector_store %arg8[%c0_20, %c0_21], %31 {strides = array<i32>} : memref<8x32xf32, #tpu.memory_space<vmem>>, vector<8x32xf32>,
    } else {
    }
    %c0 = arith.constant 0 : index
    %c0_1 = arith.constant 0 : index
    %3 = vector.load %arg2[%c0, %c0_1] : memref<8x32xbf16, #tpu.memory_space<vmem>>, vector<8x32xbf16>
    %c0_2 = arith.constant 0 : index
    %c0_3 = arith.constant 0 : index
    %4 = vector.load %arg3[%c0_2, %c0_3] : memref<32x128xbf16, #tpu.memory_space<vmem>>, vector<32x128xbf16>
    %cst = arith.constant dense<0.000000e+00> : vector<8x128xf32>
    %5 = tpu.matmul %3, %4, %cst {dimension_numbers = #tpu.dot_dimension_numbers<[1], [0], [0], [1], [0, 0, 1, 1], [], []>} : vector<8x32xbf16>, vector<32x128xbf16>, vector<8x128xf32> -> vector<8x128xf32>
    %c0_4 = arith.constant 0 : index
    %c0_5 = arith.constant 0 : index
    %6 = vector.load %arg4[%c0_4, %c0_5] : memref<1x128xf32, #tpu.memory_space<vmem>>, vector<1x128xf32>
    %7 = vector.broadcast %6 : vector<1x128xf32> to vector<8x128xf32>
    %8 = arith.addf %5, %7 : vector<8x128xf32>
    %9 = arith.mulf %8, %8 : vector<8x128xf32>
    %10 = arith.mulf %8, %9 : vector<8x128xf32>
    %cst_6 = arith.constant 4.471500e-02 : f32
    %11 = vector.broadcast %cst_6 : f32 to vector<8x128xf32>
    %12 = arith.mulf %11, %10 : vector<8x128xf32>
    %13 = arith.addf %8, %12 : vector<8x128xf32>
    %cst_7 = arith.constant 0.797884583 : f32
    %14 = vector.broadcast %cst_7 : f32 to vector<8x128xf32>
    %15 = arith.mulf %14, %13 : vector<8x128xf32>
    %16 = math.tanh %15 : vector<8x128xf32>
    %cst_8 = arith.constant 1.000000e+00 : f32
    %17 = vector.broadcast %cst_8 : f32 to vector<8x128xf32>
    %18 = arith.addf %17, %16 : vector<8x128xf32>
    %cst_9 = arith.constant 5.000000e-01 : f32
    %19 = vector.broadcast %cst_9 : f32 to vector<8x128xf32>
    %20 = arith.mulf %19, %18 : vector<8x128xf32>
    %21 = arith.mulf %8, %20 : vector<8x128xf32>
    %c0_10 = arith.constant 0 : index
    %c0_11 = arith.constant 0 : index
    %22 = vector.load %arg8[%c0_10, %c0_11] : memref<8x32xf32, #tpu.memory_space<vmem>>, vector<8x32xf32>
    %23 = arith.truncf %21 : vector<8x128xf32> to vector<8x128xbf16>
    %c0_12 = arith.constant 0 : index
    %c0_13 = arith.constant 0 : index
    %24 = vector.load %arg5[%c0_12, %c0_13] : memref<128x32xbf16, #tpu.memory_space<vmem>>, vector<128x32xbf16>
    %cst_14 = arith.constant dense<0.000000e+00> : vector<8x32xf32>
    %25 = tpu.matmul %23, %24, %cst_14 {dimension_numbers = #tpu.dot_dimension_numbers<[1], [0], [0], [1], [0, 0, 1, 1], [], []>} : vector<8x128xbf16>, vector<128x32xbf16>, vector<8x32xf32> -> vector<8x32xf32>
    %26 = arith.addf %22, %25 : vector<8x32xf32>
    %c0_15 = arith.constant 0 : index
    %c0_16 = arith.constant 0 : index
    %27 = vector.load %arg8[%c0_15, %c0_16] : memref<8x32xf32, #tpu.memory_space<vmem>>, vector<8x32xf32>
    tpu.vector_store %arg8[%c0_15, %c0_16], %26 {strides = array<i32>} : memref<8x32xf32, #tpu.memory_space<vmem>>, vector<8x32xf32>,
    %c0_i32_17 = arith.constant 0 : i32
    %28 = arith.cmpi eq, %arg1, %c0_i32_17 : i32
    %29 = arith.extui %28 : i1 to i32
    %c0_i32_18 = arith.constant 0 : i32
    %30 = arith.cmpi ne, %29, %c0_i32_18 : i32
    scf.if %30 {
      %c0_19 = arith.constant 0 : index
      %c0_20 = arith.constant 0 : index
      %31 = vector.load %arg8[%c0_19, %c0_20] : memref<8x32xf32, #tpu.memory_space<vmem>>, vector<8x32xf32>
      %c0_21 = arith.constant 0 : index
      %c0_22 = arith.constant 0 : index
      %32 = vector.load %arg6[%c0_21, %c0_22] : memref<1x32xf32, #tpu.memory_space<vmem>>, vector<1x32xf32>
      %33 = vector.broadcast %32 : vector<1x32xf32> to vector<8x32xf32>
      %34 = arith.addf %31, %33 : vector<8x32xf32>
      %c0_23 = arith.constant 0 : index
      %c0_24 = arith.constant 0 : index
      %35 = vector.load %arg7[%c0_23, %c0_24] : memref<8x32xf32, #tpu.memory_space<vmem>>, vector<8x32xf32>
      tpu.vector_store %arg7[%c0_23, %c0_24], %34 {strides = array<i32>} : memref<8x32xf32, #tpu.memory_space<vmem>>, vector<8x32xf32>,
    } else {
    }
    return
  }
  func.func @transform_0(%arg0: i32, %arg1: i32) -> (i32, i32) {
    %c0_i32 = arith.constant 0 : i32
    %c0_i32_0 = arith.constant 0 : i32
    return %arg0, %c0_i32 : i32, i32
  }
  func.func @transform_1(%arg0: i32, %arg1: i32) -> (i32, i32) {
    %c0_i32 = arith.constant 0 : i32
    %c0_i32_0 = arith.constant 0 : i32
    return %c0_i32, %arg1 : i32, i32
  }
  func.func @transform_2(%arg0: i32, %arg1: i32) -> (i32, i32) {
    %c0_i32 = arith.constant 0 : i32
    %c0_i32_0 = arith.constant 0 : i32
    return %c0_i32, %arg1 : i32, i32
  }
  func.func @transform_3(%arg0: i32, %arg1: i32) -> (i32, i32) {
    %c0_i32 = arith.constant 0 : i32
    %c0_i32_0 = arith.constant 0 : i32
    return %arg1, %c0_i32 : i32, i32
  }
  func.func @transform_4(%arg0: i32, %arg1: i32) -> (i32, i32) {
    %c0_i32 = arith.constant 0 : i32
    %c0_i32_0 = arith.constant 0 : i32
    %c0_i32_1 = arith.constant 0 : i32
    return %c0_i32, %c0_i32_0 : i32, i32
  }
  func.func @transform_5(%arg0: i32, %arg1: i32) -> (i32, i32) {
    %c0_i32 = arith.constant 0 : i32
    %c0_i32_0 = arith.constant 0 : i32
    return %arg0, %c0_i32 : i32, i32
  }
}

</mosaic_0001>

<llo_original>
// kernel: tpu_custom_call.1
$region0: #{tpu_custom_call.1}
  #allocation0 [shape = 'u32[]', space=smem, size = 0x4, offset = 0x4, fixed_abs, tag = 'smem constant byte address 0x4 - core index']
  #allocation1 [shape = 'u32[144,128]{1,0:T(1,128)}', space=vmem, size = 0x12000, scoped, tag = 'internal scratch']
  #allocation2 [shape = 'f32[8,32]{1,0:T(8,128)}', space=vmem, size = 0x1000, scoped, tag = 'scratch operand']
  %s0 = inlined_call_operand.vmem [shape: bf16[16,32], index: 0, kind: input, shape index: {}]
  %s1 = inlined_call_operand.vmem [shape: bf16[32,128], index: 1, kind: input, shape index: {}]
  %s2 = inlined_call_operand.vmem [shape: f32[1,128], index: 2, kind: input, shape index: {}]
  %s3 = inlined_call_operand.vmem [shape: bf16[128,32], index: 3, kind: input, shape index: {}]
  %s4 = inlined_call_operand.vmem [shape: f32[1,32], index: 4, kind: input, shape index: {}]
  %s5 = inlined_call_operand.hbm [shape: f32[16,32], index: 5, kind: output, shape index: {}]
  %s6 = sld [smem:[#allocation0]]
  $region61: #{tpu_custom_call.1} parent=0
    _
  %s8 = ssub.s32 1, %s6
  %s9 = scalar_select 0, %s8, %s6
  $region1: #{tpu_custom_call.1} parent=0
    #allocation3 [shape = 'u8[8192]{0}', space=vmem, size = 0x2000, scoped, tag = 'output window, operand 0']
    #allocation4 [shape = 's32[2]{0}', space=sflag, size = 0x8, scoped, tag = 'scoped memory for tpu_custom_call.1']
    %10 = vsyncpa [#allocation4], 0
    %s11 = scalar_lea.sflag [#allocation4], 1
    %12 = vsyncpa %s11, 0
    loop: start=0, step=1, limit=4
    $region2: #{tpu_custom_call.1} parent=1 // loop_pre_header
      _
    $region3: #{tpu_custom_call.1} parent=1 // loop_header
      %s14 = sphi 0, %s18
      %p15 = scmp.ge.s32.totalorder %s14, 4
      %s21 = sphi 0, %s33
      %s22 = sphi 0, %s29
      %s23 = sphi 0, %s21
      %s24 = sphi 0, %s22
      %s25 = sphi 0, %s23
      %s26 = sphi 0, %s24
      %s36 = sphi 0, %s38
      %s39 = sphi 0, %s36
      %s40 = sphi 0, %s39
      %s56 = sphi 0, %s40
      %s62 = sphi 0, %s64
      %s65 = sphi 0, %s62
      %s66 = sphi 0, %s65
      %s82 = sphi 0, %s66
      %s88 = sphi 0, %s90
      %s91 = sphi 0, %s88
      %s92 = sphi 0, %s91
      %s108 = sphi 0, %s92
      %s114 = sphi 0, %s116
      %s117 = sphi 0, %s114
      %s118 = sphi 0, %s117
      %s134 = sphi 0, %s118
      %s138 = sphi 0, %s138
      %s140 = sphi 0, %s138
      %s141 = sphi 0, %s140
      %s155 = sphi 0, %s141
      %s161 = sphi 0, %s163
      %s164 = sphi 0, %s161
      %s165 = sphi 0, %s164
      %s181 = sphi 0, %s165
    $region4: #{tpu_custom_call.1} parent=1 // loop_header_branch
      %17 = sbr.rel (%p15) target = $region8
    $region5: #{tpu_custom_call.1} parent=1 // loop_body
      %s19 = ssub.s32 %s14, 1
      %s20 = ssub.s32 %s14, 2
      %s27 = sadd.s32 1, %s22
      %p28 = scmp.ge.s32.totalorder %s27, 1
      %s29 = scalar_select %p28, 0, %s27
      %s30 = sadd.s32 1, %s21
      %s31 = scalar_select %p28, %s30, %s21
      %p32 = scmp.ge.s32.totalorder %s31, 2
      %s33 = scalar_select %p32, 0, %s31
      %s34 = ssub.s32 %s21, %s33
      %p35 = scmp.eq.s32.totalorder %s34, 0
      %s37 = sadd.s32 %s36, 1
      %s38 = scalar_select %p35, %s36, %s37
      %p41 = pneg %p35
      %p42 = scmp.eq.s32.totalorder %s14, 1
      %p43 = por %p41, %p42
      %p44 = scmp.ne.s32.totalorder %s36, %s39
      %p45 = scmp.eq.s32.totalorder %s14, 0
      %p46 = por %p44, %p45
      %p47 = scmp.ne.s32.totalorder %s36, %s39
      %p48 = scmp.eq.s32.totalorder %s19, 1
      %p49 = por %p47, %p48
      %p50 = scmp.ne.s32.totalorder %s39, %s40
      %p51 = scmp.eq.s32.totalorder %s19, 0
      %p52 = por %p50, %p51
      %p53 = scmp.ne.s32.totalorder %s39, %s40
      %p54 = scmp.eq.s32.totalorder %s20, 1
      %p55 = por %p53, %p54
      %p57 = scmp.ne.s32.totalorder %s40, %s56
      %p58 = scmp.eq.s32.totalorder %s20, 0
      %p59 = por %p57, %p58
      %s60 = ssub.s32 %s22, %s29
      %p61 = scmp.eq.s32.totalorder %s60, 0
      %s63 = sadd.s32 %s62, 1
      %s64 = scalar_select %p61, %s62, %s63
      %p67 = pneg %p61
      %p68 = scmp.eq.s32.totalorder %s14, 1
      %p69 = por %p67, %p68
      %p70 = scmp.ne.s32.totalorder %s62, %s65
      %p71 = scmp.eq.s32.totalorder %s14, 0
      %p72 = por %p70, %p71
      %p73 = scmp.ne.s32.totalorder %s62, %s65
      %p74 = scmp.eq.s32.totalorder %s19, 1
      %p75 = por %p73, %p74
      %p76 = scmp.ne.s32.totalorder %s65, %s66
      %p77 = scmp.eq.s32.totalorder %s19, 0
      %p78 = por %p76, %p77
      %p79 = scmp.ne.s32.totalorder %s65, %s66
      %p80 = scmp.eq.s32.totalorder %s20, 1
      %p81 = por %p79, %p80
      %p83 = scmp.ne.s32.totalorder %s66, %s82
      %p84 = scmp.eq.s32.totalorder %s20, 0
      %p85 = por %p83, %p84
      %s86 = ssub.s32 %s22, %s29
      %p87 = scmp.eq.s32.totalorder %s86, 0
      %s89 = sadd.s32 %s88, 1
      %s90 = scalar_select %p87, %s88, %s89
      %p93 = pneg %p87
      %p94 = scmp.eq.s32.totalorder %s14, 1
      %p95 = por %p93, %p94
      %p96 = scmp.ne.s32.totalorder %s88, %s91
      %p97 = scmp.eq.s32.totalorder %s14, 0
      %p98 = por %p96, %p97
      %p99 = scmp.ne.s32.totalorder %s88, %s91
      %p100 = scmp.eq.s32.totalorder %s19, 1
      %p101 = por %p99, %p100
      %p102 = scmp.ne.s32.totalorder %s91, %s92
      %p103 = scmp.eq.s32.totalorder %s19, 0
      %p104 = por %p102, %p103
      %p105 = scmp.ne.s32.totalorder %s91, %s92
      %p106 = scmp.eq.s32.totalorder %s20, 1
      %p107 = por %p105, %p106
      %p109 = scmp.ne.s32.totalorder %s92, %s108
      %p110 = scmp.eq.s32.totalorder %s20, 0
      %p111 = por %p109, %p110
      %s112 = ssub.s32 %s22, %s29
      %p113 = scmp.eq.s32.totalorder %s112, 0
      %s115 = sadd.s32 %s114, 1
      %s116 = scalar_select %p113, %s114, %s115
      %p119 = pneg %p113
      %p120 = scmp.eq.s32.totalorder %s14, 1
      %p121 = por %p119, %p120
      %p122 = scmp.ne.s32.totalorder %s114, %s117
      %p123 = scmp.eq.s32.totalorder %s14, 0
      %p124 = por %p122, %p123
      %p125 = scmp.ne.s32.totalorder %s114, %s117
      %p126 = scmp.eq.s32.totalorder %s19, 1
      %p127 = por %p125, %p126
      %p128 = scmp.ne.s32.totalorder %s117, %s118
      %p129 = scmp.eq.s32.totalorder %s19, 0
      %p130 = por %p128, %p129
      %p131 = scmp.ne.s32.totalorder %s117, %s118
      %p132 = scmp.eq.s32.totalorder %s20, 1
      %p133 = por %p131, %p132
      %p135 = scmp.ne.s32.totalorder %s118, %s134
      %p136 = scmp.eq.s32.totalorder %s20, 0
      %p137 = por %p135, %p136
      %s139 = sadd.s32 %s138, 1
      %p142 = scmp.eq.s32.totalorder %s14, 1
      %p143 = scmp.ne.s32.totalorder %s138, %s140
      %p144 = scmp.eq.s32.totalorder %s14, 0
      %p145 = por %p143, %p144
      %p146 = scmp.ne.s32.totalorder %s138, %s140
      %p147 = scmp.eq.s32.totalorder %s19, 1
      %p148 = por %p146, %p147
      %p149 = scmp.ne.s32.totalorder %s140, %s141
      %p150 = scmp.eq.s32.totalorder %s19, 0
      %p151 = por %p149, %p150
      %p152 = scmp.ne.s32.totalorder %s140, %s141
      %p153 = scmp.eq.s32.totalorder %s20, 1
      %p154 = por %p152, %p153
      %p156 = scmp.ne.s32.totalorder %s141, %s155
      %p157 = scmp.eq.s32.totalorder %s20, 0
      %p158 = por %p156, %p157
      %s159 = ssub.s32 %s21, %s33
      %p160 = scmp.eq.s32.totalorder %s159, 0
      %s162 = sadd.s32 %s161, 1
      %s163 = scalar_select %p160, %s161, %s162
      %p166 = pneg %p160
      %p167 = scmp.eq.s32.totalorder %s14, 1
      %p168 = por %p166, %p167
      %p169 = scmp.ne.s32.totalorder %s161, %s164
      %p170 = scmp.eq.s32.totalorder %s14, 0
      %p171 = por %p169, %p170
      %p172 = scmp.ne.s32.totalorder %s161, %s164
      %p173 = scmp.eq.s32.totalorder %s19, 1
      %p174 = por %p172, %p173
      %p175 = scmp.ne.s32.totalorder %s164, %s165
      %p176 = scmp.eq.s32.totalorder %s19, 0
      %p177 = por %p175, %p176
      %p178 = scmp.ne.s32.totalorder %s164, %s165
      %p179 = scmp.eq.s32.totalorder %s20, 1
      %p180 = por %p178, %p179
      %p182 = scmp.ne.s32.totalorder %s165, %s181
      %p183 = scmp.eq.s32.totalorder %s20, 0
      %p184 = por %p182, %p183
      %p185 = scmp.le.s32.totalorder 1, %s14
      %p186 = scmp.lt.s32.totalorder %s14, 3
      %p187 = pnand %p185, %p186
      %p188 = pneg %p187
      // Predicated region
      $region9: #{tpu_custom_call.1} parent=5 // pred_check
        _
      $region10: #{tpu_custom_call.1} parent=5 // pred_check_branch
        %190 = sbr.rel (%p187) target = $region12
      $region11: #{tpu_custom_call.1} parent=5 // pred_region
        %s191 = ssub.s32 %s14, 1
        // Predicated region
        $region13: #{tpu_custom_call.1} parent=11 // pred_check
          %p192 = pneg %p78
        $region14: #{tpu_custom_call.1} parent=11 // pred_check_branch
          %194 = sbr.rel (%p192) target = $region16
        $region15: #{tpu_custom_call.1} parent=11 // pred_region
          %p195 = scmp.lt.s32.totalorder %s24, 0
          %s196 = scalar_select %p195, %s24, 0
          %s197 = smul.addr %s196, 4
          %s198 = scalar_lea.vmem %s1, %s197
        $region16: #{tpu_custom_call.1} parent=11 // pred_fallthru
          _
        // Predicated region
        $region17: #{tpu_custom_call.1} parent=11 // pred_check
          %p199 = pneg %p104
        $region18: #{tpu_custom_call.1} parent=11 // pred_check_branch
          %201 = sbr.rel (%p199) target = $region20
        $region19: #{tpu_custom_call.1} parent=11 // pred_region
          %p202 = scmp.lt.s32.totalorder %s24, 0
          %s203 = scalar_select %p202, %s24, 0
          %s204 = scalar_lea.vmem %s2, %s203
        $region20: #{tpu_custom_call.1} parent=11 // pred_fallthru
          _
        // Predicated region
        $region21: #{tpu_custom_call.1} parent=11 // pred_check
          %p205 = pneg %p130
        $region22: #{tpu_custom_call.1} parent=11 // pred_check_branch
          %207 = sbr.rel (%p205) target = $region24
        $region23: #{tpu_custom_call.1} parent=11 // pred_region
          %s208 = smul.u32 16, %s24
          %p209 = scmp.lt.s32.totalorder %s208, 15
          %s210 = scalar_select %p209, %s208, 15
          %s211 = smul.addr %s210, 4
          %s212 = scalar_lea.vmem %s3, %s211
          %s213 = smul.u32 16, %s24
        $region24: #{tpu_custom_call.1} parent=11 // pred_fallthru
          _
        // Predicated region
        $region25: #{tpu_custom_call.1} parent=11 // pred_check
          %p214 = pneg %p151
        $region26: #{tpu_custom_call.1} parent=11 // pred_check_branch
          %216 = sbr.rel (%p214) target = $region28
        $region27: #{tpu_custom_call.1} parent=11 // pred_region
          _
        $region28: #{tpu_custom_call.1} parent=11 // pred_fallthru
          _
      $region12: #{tpu_custom_call.1} parent=5 // pred_fallthru
        _
      %p217 = scmp.lt.s32.totalorder %s14, 2
      // Predicated region
      $region29: #{tpu_custom_call.1} parent=5 // pred_check
        %p218 = pneg %p217
      $region30: #{tpu_custom_call.1} parent=5 // pred_check_branch
        %220 = sbr.rel (%p218) target = $region32
      $region31: #{tpu_custom_call.1} parent=5 // pred_region
        // Predicated region
        $region33: #{tpu_custom_call.1} parent=31 // pred_check
          %p221 = pneg %p46
        $region34: #{tpu_custom_call.1} parent=31 // pred_check_branch
          %223 = sbr.rel (%p221) target = $region36
        $region35: #{tpu_custom_call.1} parent=31 // pred_region
          %p224 = scmp.lt.s32.totalorder %s21, 1
          %s225 = scalar_select %p224, %s21, 1
          %s226 = smul.addr %s225, 4
          %s227 = scalar_lea.vmem %s0, %s226
        $region36: #{tpu_custom_call.1} parent=31 // pred_fallthru
          _
      $region32: #{tpu_custom_call.1} parent=5 // pred_fallthru
        _
      %p228 = scmp.le.s32.totalorder 1, %s14
      %p229 = scmp.lt.s32.totalorder %s14, 3
      %p230 = pnand %p228, %p229
      %p231 = pneg %p230
      // Predicated region
      $region37: #{tpu_custom_call.1} parent=5 // pred_check
        _
      $region38: #{tpu_custom_call.1} parent=5 // pred_check_branch
        %233 = sbr.rel (%p230) target = $region40
      $region39: #{tpu_custom_call.1} parent=5 // pred_region
        %s234 = ssub.s32 %s14, 1
        %p235 = scmp.lt.s32.totalorder %s23, 1
        %s236 = scalar_select %p235, %s23, 1
        %s237 = smul.addr %s236, 4
        %s238 = scalar_lea.vmem %s0, %s237
        %p239 = pneg %p52
        %p240 = pneg %p49
        %p241 = scmp.lt.s32.totalorder %s24, 0
        %s242 = scalar_select %p241, %s24, 0
        %s243 = smul.addr %s242, 4
        %s244 = scalar_lea.vmem %s1, %s243
        %p245 = pneg %p78
        %p246 = pneg %p75
        %p247 = scmp.lt.s32.totalorder %s24, 0
        %s248 = scalar_select %p247, %s24, 0
        %s249 = scalar_lea.vmem %s2, %s248
        %p250 = pneg %p104
        %p251 = pneg %p101
        %s252 = smul.u32 16, %s24
        %p253 = scmp.lt.s32.totalorder %s252, 15
        %s254 = scalar_select %p253, %s252, 15
        %s255 = smul.addr %s254, 4
        %s256 = scalar_lea.vmem %s3, %s255
        %p257 = pneg %p130
        %p258 = pneg %p127
        %p259 = pneg %p151
        %p260 = pneg %p148
        %p261 = pneg %p177
        %p262 = pneg %p174
        %s263 = sand.u32 %s164, 1
        %s264 = scalar_lea.sflag [#allocation4], %s263
        %s265 = sand.u32 %s164, 1
        %s266 = smul.addr %s265, 8
        %s267 = scalar_lea.vmem [#allocation3], %s266
        %p268 = scmp.lt.s32.totalorder %s23, 1
        %s269 = scalar_select %p268, %s23, 1
        %s270 = smul.addr %s269, 4
        %s271 = scalar_lea.vmem %s0, %s270
        %p272 = scmp.lt.s32.totalorder %s24, 0
        %s273 = scalar_select %p272, %s24, 0
        %s274 = smul.addr %s273, 4
        %s275 = scalar_lea.vmem %s1, %s274
        %p276 = scmp.lt.s32.totalorder %s24, 0
        %s277 = scalar_select %p276, %s24, 0
        %s278 = scalar_lea.vmem %s2, %s277
        %s279 = smul.u32 16, %s24
        %p280 = scmp.lt.s32.totalorder %s279, 15
        %s281 = scalar_select %p280, %s279, 15
        %s282 = smul.addr %s281, 4
        %s283 = scalar_lea.vmem %s3, %s282
        %s284 = smul.u32 16, %s24
        %p286 = scmp.eq.s32.totalorder %s24, 0
        // Predicated region
        $region41: #{tpu_custom_call.1} parent=39 // pred_check
          %p287 = pneg %p286
        $region42: #{tpu_custom_call.1} parent=39 // pred_check_branch
          %289 = sbr.rel (%p287) target = $region44
        $region43: #{tpu_custom_call.1} parent=39 // pred_region
          %vm290 = vcmask 261120
          %291 = vst.msk [vmem:[#allocation2] sm:$0xff] %vm290, 0.0
        $region44: #{tpu_custom_call.1} parent=39 // pred_fallthru
          _
        %v292 = vld [vmem:[%s271] sm:$0xf]
        %v293 = vld [vmem:[%s275] sm:$0xf]
        %v294 = vld [vmem:[%s275 + $0x4] sm:$0xf]
        %v295 = vld [vmem:[%s275 + $0x8] sm:$0xf]
        %v296 = vld [vmem:[%s275 + $0xc] sm:$0xf]
        %v297 = vld [vmem:[%s278] sm:$0x1]
        %v299 = vlaneseq
        %v300 = vshrl.u32 %v299, 7
        %v301 = vsub.s32 0, %v300
        %v302 = vrot.slane %v297, %v301
        %v308 = vunpack.c.l.b16 %v293
        %v309 = vunpack.c.l.b16 %v294
        %v310 = vunpack.c.l.b16 %v295
        %v311 = vunpack.c.l.b16 %v296
        %v312 = vpack.c.b16 %v309, %v308
        %v313 = vpack.c.b16 %v311, %v310
        %vm316 = vcmask 261120
        %v318 = vsel %vm316, %v292, 0
        %320 = vmatprep.subr.bf16.mxu0 0
        %321 = vmatpush1.bf16.msra.mxu0 %v312
        %322 = vmatprep.subr.bf16.mxu0 0
        %323 = vmatpush1.bf16.msra.mxu0 %v313
        %324 = vmatprep.subr.bf16.mxu0 0
        %325 = vmatpush1.bf16.msra.mxu0 0
        %326 = vmatprep.subr.bf16.mxu0 0
        %327 = vmatpush1.bf16.msra.mxu0 0
        %328 = vmatprep.subr.bf16.mxu0 0
        %329 = vmatpush1.bf16.msra.mxu0 0
        %330 = vmatprep.subr.bf16.mxu0 0
        %331 = vmatpush1.bf16.msra.mxu0 0
        %332 = vmatprep.subr.bf16.mxu0 0
        %333 = vmatpush1.bf16.msra.mxu0 0
        %334 = vmatprep.subr.bf16.mxu0 0
        %335 = vmatpush1.bf16.msra.mxu0 0
        %336 = vmatprep.subr.bf16.mxu0 0
        %337 = vmatpush1.bf16.msra.mxu0 0
        %338 = vmatprep.subr.bf16.mxu0 0
        %339 = vmatpush1.bf16.msra.mxu0 0
        %340 = vmatprep.subr.bf16.mxu0 0
        %341 = vmatpush1.bf16.msra.mxu0 0
        %342 = vmatprep.subr.bf16.mxu0 0
        %343 = vmatpush1.bf16.msra.mxu0 0
        %344 = vmatprep.subr.bf16.mxu0 0
        %345 = vmatpush1.bf16.msra.mxu0 0
        %346 = vmatprep.subr.bf16.mxu0 0
        %347 = vmatpush1.bf16.msra.mxu0 0
        %348 = vmatprep.subr.bf16.mxu0 0
        %349 = vmatpush1.bf16.msra.mxu0 0
        %350 = vmatprep.subr.bf16.mxu0 0
        %351 = vmatpush1.bf16.msra.mxu0 0
        %352 = vmatprep.mubr.bf16.mxu0 0
        %353 = vmatmul.mubr.bf16.gmra.mrb[0].mxu0 %v318
        %v354 = vpop.f32.mrb[0].mxu0
        %v355 = vadd.f32 %v302, %v354
        %v356 = vpop.f32.mrb[0].mxu0
        %v357 = vpop.f32.mrb[0].mxu0
        %v358 = vpop.f32.mrb[0].mxu0
        %359 = vdwg.mxu0
        %v360 = vmul.f32 %v355, %v355
        %v361 = vmul.f32 %v355, %v360
        %v362 = vmul.f32 %v361, 0.044715
        %v363 = vadd.f32 %v355, %v362
        %v364 = vmul.f32 %v363, 0.7978846
        %v365 = vtanh.pop %v364
        %v366 = vadd.f32 %v365, 1.0
        %v367 = vmul.f32 %v366, 0.5
        %v368 = vmul.f32 %v355, %v367
        %v369 = vld [vmem:[#allocation2] sm:$0xff]
        %v370 = vpack.c.bf16 %v368, %v368
        %v371 = vld [vmem:[%s283] sm:$0xf]
        %v372 = vld [vmem:[%s283 + $0x4] sm:$0xf]
        %v373 = vld [vmem:[%s283 + $0x8] sm:$0xf]
        %v374 = vld [vmem:[%s283 + $0xc] sm:$0xf]
        %v375 = vld [vmem:[%s283 + $0x10] sm:$0xf]
        %v376 = vld [vmem:[%s283 + $0x14] sm:$0xf]
        %v377 = vld [vmem:[%s283 + $0x18] sm:$0xf]
        %v378 = vld [vmem:[%s283 + $0x1c] sm:$0xf]
        %v379 = vld [vmem:[%s283 + $0x20] sm:$0xf]
        %v380 = vld [vmem:[%s283 + $0x24] sm:$0xf]
        %v381 = vld [vmem:[%s283 + $0x28] sm:$0xf]
        %v382 = vld [vmem:[%s283 + $0x2c] sm:$0xf]
        %v383 = vld [vmem:[%s283 + $0x30] sm:$0xf]
        %v384 = vld [vmem:[%s283 + $0x34] sm:$0xf]
        %v385 = vld [vmem:[%s283 + $0x38] sm:$0xf]
        %v386 = vld [vmem:[%s283 + $0x3c] sm:$0xf]
        %v403 = vunpack.c.l.b16 %v371
        %v404 = vunpack.c.l.b16 %v372
        %v405 = vunpack.c.l.b16 %v373
        %v406 = vunpack.c.l.b16 %v374
        %v407 = vunpack.c.l.b16 %v375
        %v408 = vunpack.c.l.b16 %v376
        %v409 = vunpack.c.l.b16 %v377
        %v410 = vunpack.c.l.b16 %v378
        %v411 = vunpack.c.l.b16 %v379
        %v412 = vunpack.c.l.b16 %v380
        %v413 = vunpack.c.l.b16 %v381
        %v414 = vunpack.c.l.b16 %v382
        %v415 = vunpack.c.l.b16 %v383
        %v416 = vunpack.c.l.b16 %v384
        %v417 = vunpack.c.l.b16 %v385
        %v418 = vunpack.c.l.b16 %v386
        %v419 = vpack.c.b16 %v404, %v403
        %v420 = vpack.c.b16 %v406, %v405
        %v421 = vpack.c.b16 %v408, %v407
        %v422 = vpack.c.b16 %v410, %v409
        %v423 = vpack.c.b16 %v412, %v411
        %v424 = vpack.c.b16 %v414, %v413
        %v425 = vpack.c.b16 %v416, %v415
        %v426 = vpack.c.b16 %v418, %v417
        %435 = vmatprep.subr.bf16.mxu0 0
        %436 = vmatpush1.bf16.msra.mxu0 %v419
        %437 = vmatprep.subr.bf16.mxu0 0
        %438 = vmatpush1.bf16.msra.mxu0 %v420
        %439 = vmatprep.subr.bf16.mxu0 0
        %440 = vmatpush1.bf16.msra.mxu0 %v421
        %441 = vmatprep.subr.bf16.mxu0 0
        %442 = vmatpush1.bf16.msra.mxu0 %v422
        %443 = vmatprep.subr.bf16.mxu0 0
        %444 = vmatpush1.bf16.msra.mxu0 %v423
        %445 = vmatprep.subr.bf16.mxu0 0
        %446 = vmatpush1.bf16.msra.mxu0 %v424
        %447 = vmatprep.subr.bf16.mxu0 0
        %448 = vmatpush1.bf16.msra.mxu0 %v425
        %449 = vmatprep.subr.bf16.mxu0 0
        %450 = vmatpush1.bf16.msra.mxu0 %v426
        %451 = vmatprep.subr.bf16.mxu0 0
        %452 = vmatpush1.bf16.msra.mxu0 0
        %453 = vmatprep.subr.bf16.mxu0 0
        %454 = vmatpush1.bf16.msra.mxu0 0
        %455 = vmatprep.subr.bf16.mxu0 0
        %456 = vmatpush1.bf16.msra.mxu0 0
        %457 = vmatprep.subr.bf16.mxu0 0
        %458 = vmatpush1.bf16.msra.mxu0 0
        %459 = vmatprep.subr.bf16.mxu0 0
        %460 = vmatpush1.bf16.msra.mxu0 0
        %461 = vmatprep.subr.bf16.mxu0 0
        %462 = vmatpush1.bf16.msra.mxu0 0
        %463 = vmatprep.subr.bf16.mxu0 0
        %464 = vmatpush1.bf16.msra.mxu0 0
        %465 = vmatprep.subr.bf16.mxu0 0
        %466 = vmatpush1.bf16.msra.mxu0 0
        %467 = vmatprep.mubr.bf16.mxu0 0
        %468 = vmatmul.mubr.bf16.gmra.mrb[0].mxu0 %v370
        %v469 = vpop.f32.mrb[0].mxu0
        %v470 = vadd.f32 0.0, %v469
        %v471 = vpop.f32.mrb[0].mxu0
        %v472 = vpop.f32.mrb[0].mxu0
        %v473 = vpop.f32.mrb[0].mxu0
        %474 = vdwg.mxu0
        %v475 = vadd.f32 %v369, %v470
        %476 = vst.msk [vmem:[#allocation2] sm:$0xff] %vm316, %v475
        // Predicated region
        $region45: #{tpu_custom_call.1} parent=39 // pred_check
          %p477 = pneg %p286
        $region46: #{tpu_custom_call.1} parent=39 // pred_check_branch
          %479 = sbr.rel (%p477) target = $region48
        $region47: #{tpu_custom_call.1} parent=39 // pred_region
          %v480 = vld [vmem:[#allocation2] sm:$0xff]
          %v481 = vld [vmem:[%s4] sm:$0x1]
          %v483 = vlaneseq
          %v484 = vshrl.u32 %v483, 7
          %v485 = vsub.s32 0, %v484
          %v486 = vrot.slane %v481, %v485
          %v488 = vadd.f32 %v480, %v486
          %489 = vst.msk [vmem:[%s267] sm:$0xff] %vm316, %v488
        $region48: #{tpu_custom_call.1} parent=39 // pred_fallthru
          _
        %s490 = sand.u32 %s164, 1
        %s491 = scalar_lea.sflag [#allocation4], %s490
        %s492 = sand.u32 %s164, 1
        %s493 = smul.addr %s492, 8
        %s494 = scalar_lea.vmem [#allocation3], %s493
        // Predicated region
        $region49: #{tpu_custom_call.1} parent=39 // pred_check
          %p495 = pneg %p174
        $region50: #{tpu_custom_call.1} parent=39 // pred_check_branch
          %497 = sbr.rel (%p495) target = $region52
        $region51: #{tpu_custom_call.1} parent=39 // pred_region
          %s499 = ssub.s32 128, 128
          %500 = vsyncadd %s491, %s499
          %s501 = smul.addr %s23, 128
          %s502 = scalar_lea.hbm %s5, %s501
          %s504 = sshll.u32 %s494, 4
          %s505 = int_to_ptr.vmem [resolvable:$true] %s504
          %507 = dma.vmem_to_hbm [thread:$0]  %s505, 128, %s502, %s491
        $region52: #{tpu_custom_call.1} parent=39 // pred_fallthru
          _
      $region40: #{tpu_custom_call.1} parent=5 // pred_fallthru
        _
      %p508 = scmp.le.s32.totalorder 2, %s14
      // Predicated region
      $region53: #{tpu_custom_call.1} parent=5 // pred_check
        %p509 = pneg %p508
      $region54: #{tpu_custom_call.1} parent=5 // pred_check_branch
        %511 = sbr.rel (%p509) target = $region56
      $region55: #{tpu_custom_call.1} parent=5 // pred_region
        %s512 = ssub.s32 %s14, 2
        // Predicated region
        $region57: #{tpu_custom_call.1} parent=55 // pred_check
          %p513 = pneg %p180
        $region58: #{tpu_custom_call.1} parent=55 // pred_check_branch
          %515 = sbr.rel (%p513) target = $region60
        $region59: #{tpu_custom_call.1} parent=55 // pred_region
          %s516 = sand.u32 %s165, 1
          %s517 = scalar_lea.sflag [#allocation4], %s516
          %s518 = sand.u32 %s165, 1
          %s519 = smul.addr %s518, 8
          %s520 = scalar_lea.vmem [#allocation3], %s519
          %521 = dma.done %s517, 128
        $region60: #{tpu_custom_call.1} parent=55 // pred_fallthru
          _
      $region56: #{tpu_custom_call.1} parent=5 // pred_fallthru
        _
    $region6: #{tpu_custom_call.1} parent=1 // loop_footer
      %s18 = sadd.s32 1, %s14
    $region7: #{tpu_custom_call.1} parent=1 // loop_footer_branch
      %13 = sbr.rel target = $region3
    $region8: #{tpu_custom_call.1} parent=1 // loop_exit
      _
    %522 = vsyncpa [#allocation4], 1
    %s523 = scalar_lea.sflag [#allocation4], 1
    %524 = vsyncpa %s523, 1

</llo_original>
